<compile_context>
chip_gen: v6e
topology: v6e:2x2x1
jax: 0.10.0
libtpu: 0.0.40
codegen_flags: <defaults>
</compile_context>

<pallas_src>
import functools
import numpy as np
import jax
import jax.numpy as jnp
from jax.experimental import pallas as pl
from jax.experimental.pallas import tpu as pltpu


# --------------------------------------------------------------------------- #
# Kernel
# --------------------------------------------------------------------------- #
def egcl_at_kernel(h_ref, coord_ref,
                   w1_ref, b1_ref, w2_ref, b2_ref,
                   wc1_ref, bc1_ref, wc2_ref,
                   h_out_ref, coord_out_ref,
                   *, with_mask):
    f32 = jnp.float32
    bf16 = jnp.bfloat16

    h = h_ref[...]                         # [bB, T, H]  f32
    coord = coord_ref[...]                 # [bB, T, 3]  f32
    bB, T, H = h.shape
    n_rows = bB * T
    h2 = h.reshape(n_rows, H).astype(bf16)

    # ---- fused q/k/v MLPs (lane-dense MXU passes, bf16 ops / f32 acc) ------
    # layer 1: one wide matmul against [Wq1 | Wk1 | Wv1]          -> [N, 3H]
    y1 = jax.nn.relu(
        jnp.dot(h2, w1_ref[...], preferred_element_type=f32) + b1_ref[...])
    # layer 2: one matmul against blockdiag(Wq2, Wk2, Wv2)        -> [N, 3H]
    qkv = jax.nn.relu(
        jnp.dot(y1.astype(bf16), w2_ref[...], preferred_element_type=f32)
        + b2_ref[...])

    q = qkv[:, 0 * H:1 * H].reshape(bB, T, H)
    k = qkv[:, 1 * H:2 * H].reshape(bB, T, H)
    v2 = qkv[:, 2 * H:3 * H]                                   # [N, H]
    v = v2.reshape(bB, T, H)

    # ---- coord_mlp(v): Linear(H,H)+ReLU, then the H->1 projection on VPU ---
    c1 = jax.nn.relu(
        jnp.dot(v2.astype(bf16), wc1_ref[...], preferred_element_type=f32)
        + bc1_ref[...])                                        # [N, H]
    cm = jnp.sum(c1 * wc2_ref[...], axis=-1, keepdims=True)    # [N, 1]  f32
    cm3 = cm.reshape(bB, T, 1)

    # ---- attention ---------------------------------------------------------
    scores = jnp.einsum('bid,bjd->bij', q.astype(bf16), k.astype(bf16),
                        preferred_element_type=f32)            # [bB, T, T]
    if with_mask:
        ii = jax.lax.broadcasted_iota(jnp.int32, (T, T), 0)
        jj = jax.lax.broadcasted_iota(jnp.int32, (T, T), 1)
        scores = jnp.where((jj <= ii)[None, :, :], scores, f32(-1e9))
    scores = scores - jnp.max(scores, axis=-1, keepdims=True)  # stable softmax
    e = jnp.exp(scores)
    alpha = e / jnp.sum(e, axis=-1, keepdims=True)             # exact, f32

    # ---- fused aggregation: one alpha @ [v | cm*coord | cm] pass -----------
    # h_agg = alpha @ v
    # x_agg = alpha @ (cm*coord) - coord * (alpha @ cm)
    av = jnp.concatenate([v, cm3 * coord, cm3], axis=-1)       # [bB, T, H+4]
    agg = jnp.einsum('bij,bjd->bid', alpha.astype(bf16), av.astype(bf16),
                     preferred_element_type=f32)               # [bB, T, H+4]
    h_agg = agg[..., 0:H]
    x_agg = agg[..., H:H + 3] - coord * agg[..., H + 3:H + 4]

    h_out_ref[...] = (h + h_agg).astype(h_out_ref.dtype)       # recurrent=True
    coord_out_ref[...] = (coord + x_agg).astype(coord_out_ref.dtype)


# --------------------------------------------------------------------------- #
# Generation-aware sizing
# --------------------------------------------------------------------------- #
def _vmem_limit_bytes():
    """Pick a scoped-VMEM limit from the actual chip's VMEM capacity."""
    cap = None
    try:
        info = pltpu.get_tpu_info()
        cap = getattr(info, "vmem_capacity_bytes", None)
    except Exception:
        cap = None
    if not cap or cap <= 0:
        cap = 64 * 1024 * 1024          # conservative default (v7x per-TC VMEM)
    # 3/4 of physical VMEM, never above 96 MiB: ~48 MiB on v7x, ~96 MiB on
    # v5e/v6e -- leaves headroom for compiler scratch.
    return int(min(cap * 3 // 4, 96 * 1024 * 1024))


def _per_batch_vmem_bytes(T, H):
    """Conservative live-bytes estimate per batch row inside the kernel."""
    f32 = 4
    blocks = 4 * T * (H + 3) * f32                       # h/coord in+out, dbl-buffered
    mlps = T * (3 * H + 3 * H + H + 2 * (H + 4)) * f32   # y1, qkv, c1, av, agg
    attn = 3 * T * T * f32                               # scores, e, alpha
    casts = (3 * T * H + T * T + T * (H + 4)) * 2        # bf16 temporaries
    return blocks + mlps + attn + casts


def _pick_block_b(B, T, H, vmem_limit, target_steps=8):
    """Largest divisor of B that fits half the VMEM budget and keeps >=target_steps
    grid steps (prefer an even grid length for v7x dual-TC sharding)."""
    per_b = max(1, _per_batch_vmem_bytes(T, H))
    cap = max(1, vmem_limit // (2 * per_b))
    divisors = [d for d in range(1, B + 1) if B % d == 0]
    target = min(max(2, target_steps), B)
    cands = [d for d in divisors if d <= cap and (B // d) >= target]
    if not cands:
        cands = [d for d in divisors if d <= cap] or [1]
    even = [d for d in cands if (B // d) % 2 == 0]
    pool = even if even else cands
    return max(pool)


# --------------------------------------------------------------------------- #
# Host-side weight packing (bf16 matrices, f32 biases)
# --------------------------------------------------------------------------- #
def pack_params(params):
    bf16 = jnp.bfloat16
    f32 = jnp.float32
    H = params["wq1"].shape[0]
    z = jnp.zeros((H, H), f32)
    w1 = jnp.concatenate([params["wq1"], params["wk1"], params["wv1"]], axis=1)
    b1 = jnp.concatenate([params["bq1"], params["bk1"], params["bv1"]], axis=1)
    w2 = jnp.concatenate([
        jnp.concatenate([params["wq2"], z, z], axis=1),
        jnp.concatenate([z, params["wk2"], z], axis=1),
        jnp.concatenate([z, z, params["wv2"]], axis=1)], axis=0)
    b2 = jnp.concatenate([params["bq2"], params["bk2"], params["bv2"]], axis=1)
    wc2_row = params["wc2"].reshape(1, H)
    return (w1.astype(bf16), b1.astype(f32),
            w2.astype(bf16), b2.astype(f32),
            params["wc1"].astype(bf16), params["bc1"].astype(f32),
            wc2_row.astype(f32))


# --------------------------------------------------------------------------- #
# Wrapper
# --------------------------------------------------------------------------- #
def e_gcl_at_forward(params, h, coord, *, block_b=None, with_mask=False):
    B, T, H = h.shape
    assert coord.shape == (B, T, 3)

    vmem_limit = _vmem_limit_bytes()
    if block_b is None:
        block_b = _pick_block_b(B, T, H, vmem_limit)
    assert B % block_b == 0, "batch must be divisible by block_b"
    grid = (B // block_b,)

    weights = pack_params(params)

    def batch_spec(feat):
        return pl.BlockSpec((block_b, T, feat), lambda b: (b, 0, 0))

    def resident_spec(w):
        # Constant block index -> stays resident in VMEM across grid steps.
        return pl.BlockSpec(w.shape, lambda b, n=w.ndim: (0,) * n)

    in_specs = [batch_spec(H), batch_spec(3)] + [resident_spec(w) for w in weights]
    out_specs = (batch_spec(H), batch_spec(3))
    out_shape = (jax.ShapeDtypeStruct((B, T, H), jnp.float32),
                 jax.ShapeDtypeStruct((B, T, 3), jnp.float32))

    kernel = functools.partial(egcl_at_kernel, with_mask=with_mask)
    return pl.pallas_call(
        kernel,
        grid=grid,
        in_specs=in_specs,
        out_specs=out_specs,
        out_shape=out_shape,
        compiler_params=pltpu.CompilerParams(
            dimension_semantics=("parallel",),     # shard batch blocks across TCs
            vmem_limit_bytes=vmem_limit),
    )(h, coord, *weights)


# --------------------------------------------------------------------------- #
# Synthetic params + pure-JAX reference
# --------------------------------------------------------------------------- #
def init_params(key, hidden_nf):
    """Deterministic synthetic weights (PyTorch-Linear-style uniform init)."""
    def linear(k, fan_in, fan_out):
        kw, kb = jax.random.split(k)
        bound = 1.0 / np.sqrt(fan_in)
        w = jax.random.uniform(kw, (fan_in, fan_out), jnp.float32, -bound, bound)
        b = jax.random.uniform(kb, (1, fan_out), jnp.float32, -bound, bound)
        return w, b

    keys = jax.random.split(key, 8)
    wq1, bq1 = linear(keys[0], hidden_nf, hidden_nf)
    wq2, bq2 = linear(keys[1], hidden_nf, hidden_nf)
    wk1, bk1 = linear(keys[2], hidden_nf, hidden_nf)
    wk2, bk2 = linear(keys[3], hidden_nf, hidden_nf)
    wv1, bv1 = linear(keys[4], hidden_nf, hidden_nf)
    wv2, bv2 = linear(keys[5], hidden_nf, hidden_nf)
    wc1, bc1 = linear(keys[6], hidden_nf, hidden_nf)
    xb = 0.001 * np.sqrt(6.0 / (hidden_nf + 1))          # xavier_uniform(gain=0.001)
    wc2 = jax.random.uniform(keys[7], (hidden_nf, 1), jnp.float32, -xb, xb)
    return dict(wq1=wq1, bq1=bq1, wq2=wq2, bq2=bq2,
                wk1=wk1, bk1=bk1, wk2=wk2, bk2=bk2,
                wv1=wv1, bv1=bv1, wv2=wv2, bv2=bv2,
                wc1=wc1, bc1=bc1, wc2=wc2)


def e_gcl_at_reference(params, h, coord, with_mask=False):
    """Pure-JAX f32 reference mirroring the PyTorch forward exactly."""
    relu = jax.nn.relu

    def mlp2(x, w1, b1, w2, b2):
        return relu(relu(x @ w1 + b1) @ w2 + b2)

    q = mlp2(h, params["wq1"], params["bq1"], params["wq2"], params["bq2"])
    k = mlp2(h, params["wk1"], params["bk1"], params["wk2"], params["bk2"])
    v = mlp2(h, params["wv1"], params["bv1"], params["wv2"], params["bv2"])
    scores = jnp.einsum('bid,bjd->bij', q, k)
    if with_mask:
        T = scores.shape[1]
        mask = jnp.tril(jnp.ones((T, T), bool))
        scores = jnp.where(mask[None], scores, -1e9)
    alpha = jax.nn.softmax(scores, axis=-1)
    h_agg = jnp.einsum('bij,bjd->bid', alpha, v)
    cm = relu(v @ params["wc1"] + params["bc1"]) @ params["wc2"]        # [B, T, 1]
    coord_diff = coord[:, None, :, :] - coord[:, :, None, :]            # [B, i, j, 3]
    trans = coord_diff * alpha[..., None] * cm[:, None, :, :]
    x_agg = jnp.sum(trans, axis=2)
    return h + h_agg, coord + x_agg


if __name__ == "__main__":
    key = jax.random.PRNGKey(0)
    bs, n_node, num_past, hidden_nf = 2, 4, 8, 32
    B = bs * n_node

    k1, k2, kp = jax.random.split(key, 3)
    h = jax.random.normal(k1, (B, num_past, hidden_nf), jnp.float32)
    coord = jax.random.normal(k2, (B, num_past, 3), jnp.float32)
    params = init_params(kp, hidden_nf)

    h_out, coord_out = e_gcl_at_forward(params, h, coord, with_mask=False)
    jax.block_until_ready((h_out, coord_out))

    h_ref, c_ref = e_gcl_at_reference(params, h, coord, with_mask=False)
    assert h_out.shape == (B, num_past, hidden_nf) and coord_out.shape == (B, num_past, 3)
    assert np.all(np.isfinite(np.asarray(h_out))) and np.all(np.isfinite(np.asarray(coord_out)))
    assert np.allclose(np.asarray(h_out), np.asarray(h_ref), atol=5e-2, rtol=5e-2)
    assert np.allclose(np.asarray(coord_out), np.asarray(c_ref), atol=5e-2, rtol=5e-2)
    print("KERNEL_OK")
</pallas_src>

<mosaic_0001>
module attributes {stable_mosaic.version = 11 : i64} {
  func.func @egcl_at_kernel(%arg0: i32, %arg1: memref<1x8x32xf32, #tpu.memory_space<vmem>>, %arg2: memref<1x8x3xf32, #tpu.memory_space<vmem>>, %arg3: memref<32x96xbf16, #tpu.memory_space<vmem>>, %arg4: memref<1x96xf32, #tpu.memory_space<vmem>>, %arg5: memref<96x96xbf16, #tpu.memory_space<vmem>>, %arg6: memref<1x96xf32, #tpu.memory_space<vmem>>, %arg7: memref<32x32xbf16, #tpu.memory_space<vmem>>, %arg8: memref<1x32xf32, #tpu.memory_space<vmem>>, %arg9: memref<1x32xf32, #tpu.memory_space<vmem>>, %arg10: memref<1x8x32xf32, #tpu.memory_space<vmem>>, %arg11: memref<1x8x3xf32, #tpu.memory_space<vmem>>) attributes {dimension_semantics = [#tpu.dimension_semantics<parallel>], iteration_bounds = array<i64: 8>, scalar_prefetch = 0 : i64, scratch_operands = 0 : i64, tpu.core_type = #tpu.core_type<tc>, window_params = [{transform_indices = @transform_0, window_bounds = array<i64: 1, 8, 32>}, {transform_indices = @transform_1, window_bounds = array<i64: 1, 8, 3>}, {pipeline_mode = #tpu.pipeline_mode<synchronous>, transform_indices = @transform_2, window_bounds = array<i64: 32, 96>}, {pipeline_mode = #tpu.pipeline_mode<synchronous>, transform_indices = @transform_3, window_bounds = array<i64: 1, 96>}, {pipeline_mode = #tpu.pipeline_mode<synchronous>, transform_indices = @transform_4, window_bounds = array<i64: 96, 96>}, {pipeline_mode = #tpu.pipeline_mode<synchronous>, transform_indices = @transform_5, window_bounds = array<i64: 1, 96>}, {pipeline_mode = #tpu.pipeline_mode<synchronous>, transform_indices = @transform_6, window_bounds = array<i64: 32, 32>}, {pipeline_mode = #tpu.pipeline_mode<synchronous>, transform_indices = @transform_7, window_bounds = array<i64: 1, 32>}, {pipeline_mode = #tpu.pipeline_mode<synchronous>, transform_indices = @transform_8, window_bounds = array<i64: 1, 32>}, {transform_indices = @transform_9, window_bounds = array<i64: 1, 8, 32>}, {transform_indices = @transform_10, window_bounds = array<i64: 1, 8, 3>}]} {
    %c0 = arith.constant 0 : index
    %c0_0 = arith.constant 0 : index
    %c0_1 = arith.constant 0 : index
    %0 = vector.load %arg1[%c0, %c0_0, %c0_1] : memref<1x8x32xf32, #tpu.memory_space<vmem>>, vector<1x8x32xf32>
    %c0_2 = arith.constant 0 : index
    %c0_3 = arith.constant 0 : index
    %c0_4 = arith.constant 0 : index
    %1 = vector.load %arg2[%c0_2, %c0_3, %c0_4] : memref<1x8x3xf32, #tpu.memory_space<vmem>>, vector<1x8x3xf32>
    %2 = vector.shape_cast %0 : vector<1x8x32xf32> to vector<8x32xf32>
    %3 = arith.truncf %2 : vector<8x32xf32> to vector<8x32xbf16>
    %c0_5 = arith.constant 0 : index
    %c0_6 = arith.constant 0 : index
    %4 = vector.load %arg3[%c0_5, %c0_6] : memref<32x96xbf16, #tpu.memory_space<vmem>>, vector<32x96xbf16>
    %cst = arith.constant dense<0.000000e+00> : vector<8x96xf32>
    %5 = tpu.matmul %3, %4, %cst {dimension_numbers = #tpu.dot_dimension_numbers<[1], [0], [0], [1], [0, 0, 1, 1], [], []>} : vector<8x32xbf16>, vector<32x96xbf16>, vector<8x96xf32> -> vector<8x96xf32>
    %c0_7 = arith.constant 0 : index
    %c0_8 = arith.constant 0 : index
    %6 = vector.load %arg4[%c0_7, %c0_8] : memref<1x96xf32, #tpu.memory_space<vmem>>, vector<1x96xf32>
    %7 = vector.broadcast %6 : vector<1x96xf32> to vector<8x96xf32>
    %8 = arith.addf %5, %7 : vector<8x96xf32>
    %cst_9 = arith.constant 0.000000e+00 : f32
    %9 = vector.broadcast %cst_9 : f32 to vector<8x96xf32>
    %10 = arith.maximumf %8, %9 : vector<8x96xf32>
    %11 = arith.truncf %10 : vector<8x96xf32> to vector<8x96xbf16>
    %c0_10 = arith.constant 0 : index
    %c0_11 = arith.constant 0 : index
    %12 = vector.load %arg5[%c0_10, %c0_11] : memref<96x96xbf16, #tpu.memory_space<vmem>>, vector<96x96xbf16>
    %cst_12 = arith.constant dense<0.000000e+00> : vector<8x96xf32>
    %13 = tpu.matmul %11, %12, %cst_12 {dimension_numbers = #tpu.dot_dimension_numbers<[1], [0], [0], [1], [0, 0, 1, 1], [], []>} : vector<8x96xbf16>, vector<96x96xbf16>, vector<8x96xf32> -> vector<8x96xf32>
    %c0_13 = arith.constant 0 : index
    %c0_14 = arith.constant 0 : index
    %14 = vector.load %arg6[%c0_13, %c0_14] : memref<1x96xf32, #tpu.memory_space<vmem>>, vector<1x96xf32>
    %15 = vector.broadcast %14 : vector<1x96xf32> to vector<8x96xf32>
    %16 = arith.addf %13, %15 : vector<8x96xf32>
    %cst_15 = arith.constant 0.000000e+00 : f32
    %17 = vector.broadcast %cst_15 : f32 to vector<8x96xf32>
    %18 = arith.maximumf %16, %17 : vector<8x96xf32>
    %19 = vector.extract_strided_slice %18 {offsets = [0, 0], sizes = [8, 32], strides = [1, 1]} : vector<8x96xf32> to vector<8x32xf32>
    %20 = vector.shape_cast %19 : vector<8x32xf32> to vector<1x8x32xf32>
    %21 = vector.extract_strided_slice %18 {offsets = [0, 32], sizes = [8, 32], strides = [1, 1]} : vector<8x96xf32> to vector<8x32xf32>
    %22 = vector.shape_cast %21 : vector<8x32xf32> to vector<1x8x32xf32>
    %23 = vector.extract_strided_slice %18 {offsets = [0, 64], sizes = [8, 32], strides = [1, 1]} : vector<8x96xf32> to vector<8x32xf32>
    %24 = vector.shape_cast %23 : vector<8x32xf32> to vector<1x8x32xf32>
    %25 = arith.truncf %23 : vector<8x32xf32> to vector<8x32xbf16>
    %c0_16 = arith.constant 0 : index
    %c0_17 = arith.constant 0 : index
    %26 = vector.load %arg7[%c0_16, %c0_17] : memref<32x32xbf16, #tpu.memory_space<vmem>>, vector<32x32xbf16>
    %cst_18 = arith.constant dense<0.000000e+00> : vector<8x32xf32>
    %27 = tpu.matmul %25, %26, %cst_18 {dimension_numbers = #tpu.dot_dimension_numbers<[1], [0], [0], [1], [0, 0, 1, 1], [], []>} : vector<8x32xbf16>, vector<32x32xbf16>, vector<8x32xf32> -> vector<8x32xf32>
    %c0_19 = arith.constant 0 : index
    %c0_20 = arith.constant 0 : index
    %28 = vector.load %arg8[%c0_19, %c0_20] : memref<1x32xf32, #tpu.memory_space<vmem>>, vector<1x32xf32>
    %29 = vector.broadcast %28 : vector<1x32xf32> to vector<8x32xf32>
    %30 = arith.addf %27, %29 : vector<8x32xf32>
    %cst_21 = arith.constant 0.000000e+00 : f32
    %31 = vector.broadcast %cst_21 : f32 to vector<8x32xf32>
    %32 = arith.maximumf %30, %31 : vector<8x32xf32>
    %c0_22 = arith.constant 0 : index
    %c0_23 = arith.constant 0 : index
    %33 = vector.load %arg9[%c0_22, %c0_23] : memref<1x32xf32, #tpu.memory_space<vmem>>, vector<1x32xf32>
    %34 = vector.broadcast %33 : vector<1x32xf32> to vector<8x32xf32>
    %35 = arith.mulf %32, %34 : vector<8x32xf32>
    %cst_24 = arith.constant dense<0.000000e+00> : vector<8xf32>
    %36 = vector.multi_reduction <add>, %35, %cst_24 [1] : vector<8x32xf32> to vector<8xf32>
    %37 = vector.shape_cast %36 : vector<8xf32> to vector<8x1xf32>
    %38 = vector.shape_cast %37 : vector<8x1xf32> to vector<1x8x1xf32>
    %39 = arith.truncf %20 : vector<1x8x32xf32> to vector<1x8x32xbf16>
    %40 = arith.truncf %22 : vector<1x8x32xf32> to vector<1x8x32xbf16>
    "tpu.trace_start"() <{level = 10 : i32, message = "bid,bjd->bij"}> : () -> ()
    %cst_25 = arith.constant dense<0.000000e+00> : vector<1x8x8xf32>
    %41 = tpu.matmul %39, %40, %cst_25 {dimension_numbers = #tpu.dot_dimension_numbers<[2], [2], [1], [1], [0, 0, 0, 1, 1, 1], [0], [0]>} : vector<1x8x32xbf16>, vector<1x8x32xbf16>, vector<1x8x8xf32> -> vector<1x8x8xf32>
    "tpu.trace_stop"() : () -> ()
    %cst_26 = arith.constant dense<0xFF800000> : vector<1x8xf32>
    %42 = vector.multi_reduction <maximumf>, %41, %cst_26 [2] : vector<1x8x8xf32> to vector<1x8xf32>
    %43 = vector.shape_cast %42 : vector<1x8xf32> to vector<1x8x1xf32>
    %44 = vector.broadcast %43 : vector<1x8x1xf32> to vector<1x8x8xf32>
    %45 = arith.subf %41, %44 : vector<1x8x8xf32>
    %46 = math.exp %45 : vector<1x8x8xf32>
    %cst_27 = arith.constant dense<0.000000e+00> : vector<1x8xf32>
    %47 = vector.multi_reduction <add>, %46, %cst_27 [2] : vector<1x8x8xf32> to vector<1x8xf32>
    %48 = vector.shape_cast %47 : vector<1x8xf32> to vector<1x8x1xf32>
    %49 = vector.broadcast %48 : vector<1x8x1xf32> to vector<1x8x8xf32>
    %50 = arith.divf %46, %49 : vector<1x8x8xf32>
    %51 = vector.broadcast %38 : vector<1x8x1xf32> to vector<1x8x3xf32>
    %52 = arith.mulf %51, %1 : vector<1x8x3xf32>
    %53 = tpu.concatenate %24, %52, %38 in 2 : vector<1x8x32xf32>, vector<1x8x3xf32>, vector<1x8x1xf32> -> vector<1x8x36xf32>
    %54 = arith.truncf %50 : vector<1x8x8xf32> to vector<1x8x8xbf16>
    %55 = arith.truncf %53 : vector<1x8x36xf32> to vector<1x8x36xbf16>
    "tpu.trace_start"() <{level = 10 : i32, message = "bij,bjd->bid"}> : () -> ()
    %cst_28 = arith.constant dense<0.000000e+00> : vector<1x8x36xf32>
    %56 = tpu.matmul %54, %55, %cst_28 {dimension_numbers = #tpu.dot_dimension_numbers<[2], [1], [1], [2], [0, 0, 0, 1, 1, 2], [0], [0]>} : vector<1x8x8xbf16>, vector<1x8x36xbf16>, vector<1x8x36xf32> -> vector<1x8x36xf32>
    "tpu.trace_stop"() : () -> ()
    %57 = vector.extract_strided_slice %56 {offsets = [0, 0, 0], sizes = [1, 8, 32], strides = [1, 1, 1]} : vector<1x8x36xf32> to vector<1x8x32xf32>
    %58 = vector.extract_strided_slice %56 {offsets = [0, 0, 32], sizes = [1, 8, 3], strides = [1, 1, 1]} : vector<1x8x36xf32> to vector<1x8x3xf32>
    %59 = vector.extract_strided_slice %56 {offsets = [0, 0, 35], sizes = [1, 8, 1], strides = [1, 1, 1]} : vector<1x8x36xf32> to vector<1x8x1xf32>
    %60 = vector.broadcast %59 : vector<1x8x1xf32> to vector<1x8x3xf32>
    %61 = arith.mulf %1, %60 : vector<1x8x3xf32>
    %62 = arith.subf %58, %61 : vector<1x8x3xf32>
    %63 = arith.addf %0, %57 : vector<1x8x32xf32>
    %c0_29 = arith.constant 0 : index
    %c0_30 = arith.constant 0 : index
    %c0_31 = arith.constant 0 : index
    %64 = vector.load %arg10[%c0_29, %c0_30, %c0_31] : memref<1x8x32xf32, #tpu.memory_space<vmem>>, vector<1x8x32xf32>
    tpu.vector_store %arg10[%c0_29, %c0_30, %c0_31], %63 {strides = array<i32>} : memref<1x8x32xf32, #tpu.memory_space<vmem>>, vector<1x8x32xf32>,
    %65 = arith.addf %1, %62 : vector<1x8x3xf32>
    %c0_32 = arith.constant 0 : index
    %c0_33 = arith.constant 0 : index
    %c0_34 = arith.constant 0 : index
    %66 = vector.load %arg11[%c0_32, %c0_33, %c0_34] : memref<1x8x3xf32, #tpu.memory_space<vmem>>, vector<1x8x3xf32>
    tpu.vector_store %arg11[%c0_32, %c0_33, %c0_34], %65 {strides = array<i32>} : memref<1x8x3xf32, #tpu.memory_space<vmem>>, vector<1x8x3xf32>,
    return
  }
  func.func @transform_0(%arg0: i32) -> (i32, i32, i32) {
    %c0_i32 = arith.constant 0 : i32
    %c0_i32_0 = arith.constant 0 : i32
    %c0_i32_1 = arith.constant 0 : i32
    return %arg0, %c0_i32, %c0_i32_0 : i32, i32, i32
  }
  func.func @transform_1(%arg0: i32) -> (i32, i32, i32) {
    %c0_i32 = arith.constant 0 : i32
    %c0_i32_0 = arith.constant 0 : i32
    %c0_i32_1 = arith.constant 0 : i32
    return %arg0, %c0_i32, %c0_i32_0 : i32, i32, i32
  }
  func.func @transform_2(%arg0: i32) -> (i32, i32) {
    %c0_i32 = arith.constant 0 : i32
    %c0_i32_0 = arith.constant 0 : i32
    %c0_i32_1 = arith.constant 0 : i32
    return %c0_i32, %c0_i32_0 : i32, i32
  }
  func.func @transform_3(%arg0: i32) -> (i32, i32) {
    %c0_i32 = arith.constant 0 : i32
    %c0_i32_0 = arith.constant 0 : i32
    %c0_i32_1 = arith.constant 0 : i32
    return %c0_i32, %c0_i32_0 : i32, i32
  }
  func.func @transform_4(%arg0: i32) -> (i32, i32) {
    %c0_i32 = arith.constant 0 : i32
    %c0_i32_0 = arith.constant 0 : i32
    %c0_i32_1 = arith.constant 0 : i32
    return %c0_i32, %c0_i32_0 : i32, i32
  }
  func.func @transform_5(%arg0: i32) -> (i32, i32) {
    %c0_i32 = arith.constant 0 : i32
    %c0_i32_0 = arith.constant 0 : i32
    %c0_i32_1 = arith.constant 0 : i32
    return %c0_i32, %c0_i32_0 : i32, i32
  }
  func.func @transform_6(%arg0: i32) -> (i32, i32) {
    %c0_i32 = arith.constant 0 : i32
    %c0_i32_0 = arith.constant 0 : i32
    %c0_i32_1 = arith.constant 0 : i32
    return %c0_i32, %c0_i32_0 : i32, i32
  }
  func.func @transform_7(%arg0: i32) -> (i32, i32) {
    %c0_i32 = arith.constant 0 : i32
    %c0_i32_0 = arith.constant 0 : i32
    %c0_i32_1 = arith.constant 0 : i32
    return %c0_i32, %c0_i32_0 : i32, i32
  }
  func.func @transform_8(%arg0: i32) -> (i32, i32) {
    %c0_i32 = arith.constant 0 : i32
    %c0_i32_0 = arith.constant 0 : i32
    %c0_i32_1 = arith.constant 0 : i32
    return %c0_i32, %c0_i32_0 : i32, i32
  }
  func.func @transform_9(%arg0: i32) -> (i32, i32, i32) {
    %c0_i32 = arith.constant 0 : i32
    %c0_i32_0 = arith.constant 0 : i32
    %c0_i32_1 = arith.constant 0 : i32
    return %arg0, %c0_i32, %c0_i32_0 : i32, i32, i32
  }
  func.func @transform_10(%arg0: i32) -> (i32, i32, i32) {
    %c0_i32 = arith.constant 0 : i32
    %c0_i32_0 = arith.constant 0 : i32
    %c0_i32_1 = arith.constant 0 : i32
    return %arg0, %c0_i32, %c0_i32_0 : i32, i32, i32
  }
}

</mosaic_0001>

<llo_original>
// kernel: tpu_custom_call.1
$region0: #{tpu_custom_call.1}
  #allocation0 [shape = 'u32[]', space=smem, size = 0x4, offset = 0x4, fixed_abs, tag = 'smem constant byte address 0x4 - core index']
  #allocation1 [shape = 'u32[144,128]{1,0:T(1,128)}', space=vmem, size = 0x12000, scoped, tag = 'internal scratch']
  %s0 = inlined_call_operand.vmem [shape: f32[8,8,32], index: 0, kind: input, shape index: {}]
  %s1 = inlined_call_operand.vmem [shape: f32[8,8,3], index: 1, kind: input, shape index: {}]
  %s2 = inlined_call_operand.vmem [shape: bf16[32,96], index: 2, kind: input, shape index: {}]
  %s3 = inlined_call_operand.vmem [shape: f32[1,96], index: 3, kind: input, shape index: {}]
  %s4 = inlined_call_operand.hbm [shape: bf16[96,96], index: 4, kind: input, shape index: {}]
  %s5 = inlined_call_operand.hbm [shape: f32[1,96], index: 5, kind: input, shape index: {}]
  %s6 = inlined_call_operand.vmem [shape: bf16[32,32], index: 6, kind: input, shape index: {}]
  %s7 = inlined_call_operand.vmem [shape: f32[1,32], index: 7, kind: input, shape index: {}]
  %s8 = inlined_call_operand.vmem [shape: f32[1,32], index: 8, kind: input, shape index: {}]
  %s9 = inlined_call_operand.hbm [shape: f32[8,8,32], index: 9, kind: output, shape index: {0}]
  %s10 = inlined_call_operand.vmem [shape: f32[8,8,3], index: 10, kind: output, shape index: {1}]
  %11 = xla_tuple %s9, %s10
  %s12 = sld [smem:[#allocation0]]
  $region85: #{tpu_custom_call.1} parent=0
    _
  %s14 = ssub.s32 1, %s12
  %s15 = scalar_select 0, %s14, %s12
  $region1: #{tpu_custom_call.1} parent=0
    #allocation2 [shape = 'u8[24576]{0}', space=vmem, size = 0x6000, scoped, tag = 'input window, operand 4, single buffered']
    #allocation3 [shape = 's32[2]{0}', space=sflag, size = 0x8, scoped, tag = 'scoped memory for tpu_custom_call.1']
    #allocation4 [shape = 's32[2]{0}', space=sflag, size = 0x8, scoped, tag = 'scoped memory for tpu_custom_call.1']
    #allocation5 [shape = 'u8[512]{0}', space=vmem, size = 0x400, scoped, tag = 'input window, operand 5, single buffered']
    #allocation6 [shape = 's32[1]{0}', space=sflag, size = 0x4, scoped, tag = 'scoped memory for tpu_custom_call.1']
    #allocation7 [shape = 'u8[8192]{0}', space=vmem, size = 0x2000, scoped, tag = 'output window, operand 0']
    %16 = vsyncpa [#allocation3], 0
    %17 = vsyncpa [#allocation6], 0
    %18 = vsyncpa [#allocation4], 0
    %s19 = scalar_lea.sflag [#allocation4], 1
    %20 = vsyncpa %s19, 0
    loop: start=0, step=1, limit=10
    $region2: #{tpu_custom_call.1} parent=1 // loop_pre_header
      _
    $region3: #{tpu_custom_call.1} parent=1 // loop_header
      %s22 = sphi 0, %s26
      %p23 = scmp.ge.s32.totalorder %s22, 10
      %s32 = sphi 0, %s34
      %s35 = sphi 0, %s32
      %s36 = sphi 0, %s35
      %s52 = sphi 0, %s36
      %s58 = sphi 0, %s60
      %s61 = sphi 0, %s58
      %s62 = sphi 0, %s61
      %s78 = sphi 0, %s62
      %s82 = sphi 0, %s82
      %s84 = sphi 0, %s82
      %s85 = sphi 0, %s84
      %s99 = sphi 0, %s85
      %s103 = sphi 0, %s103
      %s105 = sphi 0, %s103
      %s106 = sphi 0, %s105
      %s120 = sphi 0, %s106
      %s124 = sphi 0, %s124
      %s126 = sphi 0, %s124
      %s127 = sphi 0, %s126
      %s141 = sphi 0, %s127
      %s145 = sphi 0, %s145
      %s147 = sphi 0, %s145
      %s148 = sphi 0, %s147
      %s162 = sphi 0, %s148
      %s166 = sphi 0, %s166
      %s168 = sphi 0, %s166
      %s169 = sphi 0, %s168
      %s183 = sphi 0, %s169
      %s187 = sphi 0, %s187
      %s189 = sphi 0, %s187
      %s190 = sphi 0, %s189
      %s204 = sphi 0, %s190
      %s208 = sphi 0, %s208
      %s210 = sphi 0, %s208
      %s211 = sphi 0, %s210
      %s225 = sphi 0, %s211
      %s231 = sphi 0, %s233
      %s234 = sphi 0, %s231
      %s235 = sphi 0, %s234
      %s251 = sphi 0, %s235
      %s257 = sphi 0, %s259
      %s260 = sphi 0, %s257
      %s261 = sphi 0, %s260
      %s277 = sphi 0, %s261
    $region4: #{tpu_custom_call.1} parent=1 // loop_header_branch
      %25 = sbr.rel (%p23) target = $region8
    $region5: #{tpu_custom_call.1} parent=1 // loop_body
      %s27 = ssub.s32 %s22, 1
      %s28 = ssub.s32 %s22, 2
      %s29 = sadd.s32 %s22, 1
      %s30 = ssub.s32 %s22, %s29
      %p31 = scmp.eq.s32.totalorder %s30, 0
      %s33 = sadd.s32 %s32, 1
      %s34 = scalar_select %p31, %s32, %s33
      %p37 = pneg %p31
      %p38 = scmp.eq.s32.totalorder %s22, 7
      %p39 = por %p37, %p38
      %p40 = scmp.ne.s32.totalorder %s32, %s35
      %p41 = scmp.eq.s32.totalorder %s22, 0
      %p42 = por %p40, %p41
      %p43 = scmp.ne.s32.totalorder %s32, %s35
      %p44 = scmp.eq.s32.totalorder %s27, 7
      %p45 = por %p43, %p44
      %p46 = scmp.ne.s32.totalorder %s35, %s36
      %p47 = scmp.eq.s32.totalorder %s27, 0
      %p48 = por %p46, %p47
      %p49 = scmp.ne.s32.totalorder %s35, %s36
      %p50 = scmp.eq.s32.totalorder %s28, 7
      %p51 = por %p49, %p50
      %p53 = scmp.ne.s32.totalorder %s36, %s52
      %p54 = scmp.eq.s32.totalorder %s28, 0
      %p55 = por %p53, %p54
      %s56 = ssub.s32 %s22, %s29
      %p57 = scmp.eq.s32.totalorder %s56, 0
      %s59 = sadd.s32 %s58, 1
      %s60 = scalar_select %p57, %s58, %s59
      %p63 = pneg %p57
      %p64 = scmp.eq.s32.totalorder %s22, 7
      %p65 = por %p63, %p64
      %p66 = scmp.ne.s32.totalorder %s58, %s61
      %p67 = scmp.eq.s32.totalorder %s22, 0
      %p68 = por %p66, %p67
      %p69 = scmp.ne.s32.totalorder %s58, %s61
      %p70 = scmp.eq.s32.totalorder %s27, 7
      %p71 = por %p69, %p70
      %p72 = scmp.ne.s32.totalorder %s61, %s62
      %p73 = scmp.eq.s32.totalorder %s27, 0
      %p74 = por %p72, %p73
      %p75 = scmp.ne.s32.totalorder %s61, %s62
      %p76 = scmp.eq.s32.totalorder %s28, 7
      %p77 = por %p75, %p76
      %p79 = scmp.ne.s32.totalorder %s62, %s78
      %p80 = scmp.eq.s32.totalorder %s28, 0
      %p81 = por %p79, %p80
      %s83 = sadd.s32 %s82, 1
      %p86 = scmp.eq.s32.totalorder %s22, 7
      %p87 = scmp.ne.s32.totalorder %s82, %s84
      %p88 = scmp.eq.s32.totalorder %s22, 0
      %p89 = por %p87, %p88
      %p90 = scmp.ne.s32.totalorder %s82, %s84
      %p91 = scmp.eq.s32.totalorder %s27, 7
      %p92 = por %p90, %p91
      %p93 = scmp.ne.s32.totalorder %s84, %s85
      %p94 = scmp.eq.s32.totalorder %s27, 0
      %p95 = por %p93, %p94
      %p96 = scmp.ne.s32.totalorder %s84, %s85
      %p97 = scmp.eq.s32.totalorder %s28, 7
      %p98 = por %p96, %p97
      %p100 = scmp.ne.s32.totalorder %s85, %s99
      %p101 = scmp.eq.s32.totalorder %s28, 0
      %p102 = por %p100, %p101
      %s104 = sadd.s32 %s103, 1
      %p107 = scmp.eq.s32.totalorder %s22, 7
      %p108 = scmp.ne.s32.totalorder %s103, %s105
      %p109 = scmp.eq.s32.totalorder %s22, 0
      %p110 = por %p108, %p109
      %p111 = scmp.ne.s32.totalorder %s103, %s105
      %p112 = scmp.eq.s32.totalorder %s27, 7
      %p113 = por %p111, %p112
      %p114 = scmp.ne.s32.totalorder %s105, %s106
      %p115 = scmp.eq.s32.totalorder %s27, 0
      %p116 = por %p114, %p115
      %p117 = scmp.ne.s32.totalorder %s105, %s106
      %p118 = scmp.eq.s32.totalorder %s28, 7
      %p119 = por %p117, %p118
      %p121 = scmp.ne.s32.totalorder %s106, %s120
      %p122 = scmp.eq.s32.totalorder %s28, 0
      %p123 = por %p121, %p122
      %s125 = sadd.s32 %s124, 1
      %p128 = scmp.eq.s32.totalorder %s22, 7
      %p129 = scmp.ne.s32.totalorder %s124, %s126
      %p130 = scmp.eq.s32.totalorder %s22, 0
      %p131 = por %p129, %p130
      %p132 = scmp.ne.s32.totalorder %s124, %s126
      %p133 = scmp.eq.s32.totalorder %s27, 7
      %p134 = por %p132, %p133
      %p135 = scmp.ne.s32.totalorder %s126, %s127
      %p136 = scmp.eq.s32.totalorder %s27, 0
      %p137 = por %p135, %p136
      %p138 = scmp.ne.s32.totalorder %s126, %s127
      %p139 = scmp.eq.s32.totalorder %s28, 7
      %p140 = por %p138, %p139
      %p142 = scmp.ne.s32.totalorder %s127, %s141
      %p143 = scmp.eq.s32.totalorder %s28, 0
      %p144 = por %p142, %p143
      %s146 = sadd.s32 %s145, 1
      %p149 = scmp.eq.s32.totalorder %s22, 7
      %p150 = scmp.ne.s32.totalorder %s145, %s147
      %p151 = scmp.eq.s32.totalorder %s22, 0
      %p152 = por %p150, %p151
      %p153 = scmp.ne.s32.totalorder %s145, %s147
      %p154 = scmp.eq.s32.totalorder %s27, 7
      %p155 = por %p153, %p154
      %p156 = scmp.ne.s32.totalorder %s147, %s148
      %p157 = scmp.eq.s32.totalorder %s27, 0
      %p158 = por %p156, %p157
      %p159 = scmp.ne.s32.totalorder %s147, %s148
      %p160 = scmp.eq.s32.totalorder %s28, 7
      %p161 = por %p159, %p160
      %p163 = scmp.ne.s32.totalorder %s148, %s162
      %p164 = scmp.eq.s32.totalorder %s28, 0
      %p165 = por %p163, %p164
      %s167 = sadd.s32 %s166, 1
      %p170 = scmp.eq.s32.totalorder %s22, 7
      %p171 = scmp.ne.s32.totalorder %s166, %s168
      %p172 = scmp.eq.s32.totalorder %s22, 0
      %p173 = por %p171, %p172
      %p174 = scmp.ne.s32.totalorder %s166, %s168
      %p175 = scmp.eq.s32.totalorder %s27, 7
      %p176 = por %p174, %p175
      %p177 = scmp.ne.s32.totalorder %s168, %s169
      %p178 = scmp.eq.s32.totalorder %s27, 0
      %p179 = por %p177, %p178
      %p180 = scmp.ne.s32.totalorder %s168, %s169
      %p181 = scmp.eq.s32.totalorder %s28, 7
      %p182 = por %p180, %p181
      %p184 = scmp.ne.s32.totalorder %s169, %s183
      %p185 = scmp.eq.s32.totalorder %s28, 0
      %p186 = por %p184, %p185
      %s188 = sadd.s32 %s187, 1
      %p191 = scmp.eq.s32.totalorder %s22, 7
      %p192 = scmp.ne.s32.totalorder %s187, %s189
      %p193 = scmp.eq.s32.totalorder %s22, 0
      %p194 = por %p192, %p193
      %p195 = scmp.ne.s32.totalorder %s187, %s189
      %p196 = scmp.eq.s32.totalorder %s27, 7
      %p197 = por %p195, %p196
      %p198 = scmp.ne.s32.totalorder %s189, %s190
      %p199 = scmp.eq.s32.totalorder %s27, 0
      %p200 = por %p198, %p199
      %p201 = scmp.ne.s32.totalorder %s189, %s190
      %p202 = scmp.eq.s32.totalorder %s28, 7
      %p203 = por %p201, %p202
      %p205 = scmp.ne.s32.totalorder %s190, %s204
      %p206 = scmp.eq.s32.totalorder %s28, 0
      %p207 = por %p205, %p206
      %s209 = sadd.s32 %s208, 1
      %p212 = scmp.eq.s32.totalorder %s22, 7
      %p213 = scmp.ne.s32.totalorder %s208, %s210
      %p214 = scmp.eq.s32.totalorder %s22, 0
      %p215 = por %p213, %p214
      %p216 = scmp.ne.s32.totalorder %s208, %s210
      %p217 = scmp.eq.s32.totalorder %s27, 7
      %p218 = por %p216, %p217
      %p219 = scmp.ne.s32.totalorder %s210, %s211
      %p220 = scmp.eq.s32.totalorder %s27, 0
      %p221 = por %p219, %p220
      %p222 = scmp.ne.s32.totalorder %s210, %s211
      %p223 = scmp.eq.s32.totalorder %s28, 7
      %p224 = por %p222, %p223
      %p226 = scmp.ne.s32.totalorder %s211, %s225
      %p227 = scmp.eq.s32.totalorder %s28, 0
      %p228 = por %p226, %p227
      %s229 = ssub.s32 %s22, %s29
      %p230 = scmp.eq.s32.totalorder %s229, 0
      %s232 = sadd.s32 %s231, 1
      %s233 = scalar_select %p230, %s231, %s232
      %p236 = pneg %p230
      %p237 = scmp.eq.s32.totalorder %s22, 7
      %p238 = por %p236, %p237
      %p239 = scmp.ne.s32.totalorder %s231, %s234
      %p240 = scmp.eq.s32.totalorder %s22, 0
      %p241 = por %p239, %p240
      %p242 = scmp.ne.s32.totalorder %s231, %s234
      %p243 = scmp.eq.s32.totalorder %s27, 7
      %p244 = por %p242, %p243
      %p245 = scmp.ne.s32.totalorder %s234, %s235
      %p246 = scmp.eq.s32.totalorder %s27, 0
      %p247 = por %p245, %p246
      %p248 = scmp.ne.s32.totalorder %s234, %s235
      %p249 = scmp.eq.s32.totalorder %s28, 7
      %p250 = por %p248, %p249
      %p252 = scmp.ne.s32.totalorder %s235, %s251
      %p253 = scmp.eq.s32.totalorder %s28, 0
      %p254 = por %p252, %p253
      %s255 = ssub.s32 %s22, %s29
      %p256 = scmp.eq.s32.totalorder %s255, 0
      %s258 = sadd.s32 %s257, 1
      %s259 = scalar_select %p256, %s257, %s258
      %p262 = pneg %p256
      %p263 = scmp.eq.s32.totalorder %s22, 7
      %p264 = por %p262, %p263
      %p265 = scmp.ne.s32.totalorder %s257, %s260
      %p266 = scmp.eq.s32.totalorder %s22, 0
      %p267 = por %p265, %p266
      %p268 = scmp.ne.s32.totalorder %s257, %s260
      %p269 = scmp.eq.s32.totalorder %s27, 7
      %p270 = por %p268, %p269
      %p271 = scmp.ne.s32.totalorder %s260, %s261
      %p272 = scmp.eq.s32.totalorder %s27, 0
      %p273 = por %p271, %p272
      %p274 = scmp.ne.s32.totalorder %s260, %s261
      %p275 = scmp.eq.s32.totalorder %s28, 7
      %p276 = por %p274, %p275
      %p278 = scmp.ne.s32.totalorder %s261, %s277
      %p279 = scmp.eq.s32.totalorder %s28, 0
      %p280 = por %p278, %p279
      %p281 = scmp.le.s32.totalorder 1, %s22
      %p282 = scmp.lt.s32.totalorder %s22, 9
      %p283 = pnand %p281, %p282
      %p284 = pneg %p283
      // Predicated region
      $region9: #{tpu_custom_call.1} parent=5 // pred_check
        _
      $region10: #{tpu_custom_call.1} parent=5 // pred_check_branch
        %286 = sbr.rel (%p283) target = $region12
      $region11: #{tpu_custom_call.1} parent=5 // pred_region
        %s287 = ssub.s32 %s22, 1
        // Predicated region
        $region13: #{tpu_custom_call.1} parent=11 // pred_check
          %p288 = pneg %p95
        $region14: #{tpu_custom_call.1} parent=11 // pred_check_branch
          %290 = sbr.rel (%p288) target = $region16
        $region15: #{tpu_custom_call.1} parent=11 // pred_region
          _
        $region16: #{tpu_custom_call.1} parent=11 // pred_fallthru
          _
        // Predicated region
        $region17: #{tpu_custom_call.1} parent=11 // pred_check
          %p291 = pneg %p116
        $region18: #{tpu_custom_call.1} parent=11 // pred_check_branch
          %293 = sbr.rel (%p291) target = $region20
        $region19: #{tpu_custom_call.1} parent=11 // pred_region
          _
        $region20: #{tpu_custom_call.1} parent=11 // pred_fallthru
          _
        // Predicated region
        $region21: #{tpu_custom_call.1} parent=11 // pred_check
          %p294 = pneg %p137
        $region22: #{tpu_custom_call.1} parent=11 // pred_check_branch
          %296 = sbr.rel (%p294) target = $region24
        $region23: #{tpu_custom_call.1} parent=11 // pred_region
          %s298 = ssub.s32 768, 768
          %299 = vsyncadd [#allocation3], %s298
          %s300 = sshll.u32 [#allocation2], 4
          %s301 = int_to_ptr.vmem [resolvable:$true] %s300
          %306 = dma.hbm_to_vmem [thread:$0]  %s4, 768, %s301, [#allocation3], 64, 64, 4
        $region24: #{tpu_custom_call.1} parent=11 // pred_fallthru
          _
        // Predicated region
        $region25: #{tpu_custom_call.1} parent=11 // pred_check
          %p307 = pneg %p158
        $region26: #{tpu_custom_call.1} parent=11 // pred_check_branch
          %309 = sbr.rel (%p307) target = $region28
        $region27: #{tpu_custom_call.1} parent=11 // pred_region
          %s311 = ssub.s32 16, 16
          %312 = vsyncadd [#allocation6], %s311
          %s314 = sshll.u32 [#allocation5], 4
          %s315 = int_to_ptr.vmem [resolvable:$true] %s314
          %317 = dma.hbm_to_vmem [thread:$0]  %s5, 16, %s315, [#allocation6]
        $region28: #{tpu_custom_call.1} parent=11 // pred_fallthru
          _
        // Predicated region
        $region29: #{tpu_custom_call.1} parent=11 // pred_check
          %p318 = pneg %p179
        $region30: #{tpu_custom_call.1} parent=11 // pred_check_branch
          %320 = sbr.rel (%p318) target = $region32
        $region31: #{tpu_custom_call.1} parent=11 // pred_region
          _
        $region32: #{tpu_custom_call.1} parent=11 // pred_fallthru
          _
        // Predicated region
        $region33: #{tpu_custom_call.1} parent=11 // pred_check
          %p321 = pneg %p200
        $region34: #{tpu_custom_call.1} parent=11 // pred_check_branch
          %323 = sbr.rel (%p321) target = $region36
        $region35: #{tpu_custom_call.1} parent=11 // pred_region
          _
        $region36: #{tpu_custom_call.1} parent=11 // pred_fallthru
          _
        // Predicated region
        $region37: #{tpu_custom_call.1} parent=11 // pred_check
          %p324 = pneg %p221
        $region38: #{tpu_custom_call.1} parent=11 // pred_check_branch
          %326 = sbr.rel (%p324) target = $region40
        $region39: #{tpu_custom_call.1} parent=11 // pred_region
          _
        $region40: #{tpu_custom_call.1} parent=11 // pred_fallthru
          _
      $region12: #{tpu_custom_call.1} parent=5 // pred_fallthru
        _
      %p327 = scmp.lt.s32.totalorder %s22, 8
      // Predicated region
      $region41: #{tpu_custom_call.1} parent=5 // pred_check
        %p328 = pneg %p327
      $region42: #{tpu_custom_call.1} parent=5 // pred_check_branch
        %330 = sbr.rel (%p328) target = $region44
      $region43: #{tpu_custom_call.1} parent=5 // pred_region
        // Predicated region
        $region45: #{tpu_custom_call.1} parent=43 // pred_check
          %p331 = pneg %p42
        $region46: #{tpu_custom_call.1} parent=43 // pred_check_branch
          %333 = sbr.rel (%p331) target = $region48
        $region47: #{tpu_custom_call.1} parent=43 // pred_region
          %p334 = scmp.lt.s32.totalorder %s22, 7
          %s335 = scalar_select %p334, %s22, 7
          %s336 = smul.addr %s335, 8
          %s337 = scalar_lea.vmem %s0, %s336
        $region48: #{tpu_custom_call.1} parent=43 // pred_fallthru
          _
        // Predicated region
        $region49: #{tpu_custom_call.1} parent=43 // pred_check
          %p338 = pneg %p68
        $region50: #{tpu_custom_call.1} parent=43 // pred_check_branch
          %340 = sbr.rel (%p338) target = $region52
        $region51: #{tpu_custom_call.1} parent=43 // pred_region
          %p341 = scmp.lt.s32.totalorder %s22, 7
          %s342 = scalar_select %p341, %s22, 7
          %s343 = smul.addr %s342, 8
          %s344 = scalar_lea.vmem %s1, %s343
        $region52: #{tpu_custom_call.1} parent=43 // pred_fallthru
          _
      $region44: #{tpu_custom_call.1} parent=5 // pred_fallthru
        _
      %p345 = scmp.le.s32.totalorder 1, %s22
      %p346 = scmp.lt.s32.totalorder %s22, 9
      %p347 = pnand %p345, %p346
      %p348 = pneg %p347
      // Predicated region
      $region53: #{tpu_custom_call.1} parent=5 // pred_check
        _
      $region54: #{tpu_custom_call.1} parent=5 // pred_check_branch
        %350 = sbr.rel (%p347) target = $region56
      $region55: #{tpu_custom_call.1} parent=5 // pred_region
        %s351 = ssub.s32 %s22, 1
        // Predicated region
        $region57: #{tpu_custom_call.1} parent=55 // pred_check
          %p352 = pneg %p137
        $region58: #{tpu_custom_call.1} parent=55 // pred_check_branch
          %354 = sbr.rel (%p352) target = $region60
        $region59: #{tpu_custom_call.1} parent=55 // pred_region
          %355 = dma.done [#allocation3], 768
        $region60: #{tpu_custom_call.1} parent=55 // pred_fallthru
          _
        // Predicated region
        $region61: #{tpu_custom_call.1} parent=55 // pred_check
          %p356 = pneg %p158
        $region62: #{tpu_custom_call.1} parent=55 // pred_check_branch
          %358 = sbr.rel (%p356) target = $region64
        $region63: #{tpu_custom_call.1} parent=55 // pred_region
          %359 = dma.done [#allocation6], 16
        $region64: #{tpu_custom_call.1} parent=55 // pred_fallthru
          _
        %p360 = scmp.lt.s32.totalorder %s27, 7
        %s361 = scalar_select %p360, %s27, 7
        %s362 = smul.addr %s361, 8
        %s363 = scalar_lea.vmem %s0, %s362
        %p364 = pneg %p48
        %p365 = pneg %p45
        %p366 = scmp.lt.s32.totalorder %s27, 7
        %s367 = scalar_select %p366, %s27, 7
        %s368 = smul.addr %s367, 8
        %s369 = scalar_lea.vmem %s1, %s368
        %p370 = pneg %p74
        %p371 = pneg %p71
        %p372 = pneg %p95
        %p373 = pneg %p92
        %p374 = pneg %p116
        %p375 = pneg %p113
        %p376 = pneg %p137
        %p377 = pneg %p134
        %p378 = pneg %p158
        %p379 = pneg %p155
        %p380 = pneg %p179
        %p381 = pneg %p176
        %p382 = pneg %p200
        %p383 = pneg %p197
        %p384 = pneg %p221
        %p385 = pneg %p218
        %p386 = pneg %p247
        %p387 = pneg %p244
        %s388 = sand.u32 %s234, 1
        %s389 = scalar_lea.sflag [#allocation4], %s388
        %s390 = sand.u32 %s234, 1
        %s391 = smul.addr %s390, 8
        %s392 = scalar_lea.vmem [#allocation7], %s391
        %p393 = pneg %p273
        %p394 = pneg %p270
        %p395 = scmp.lt.s32.totalorder %s27, 7
        %s396 = scalar_select %p395, %s27, 7
        %s397 = smul.addr %s396, 8
        %s398 = scalar_lea.vmem %s10, %s397
        %p399 = scmp.lt.s32.totalorder %s27, 7
        %s400 = scalar_select %p399, %s27, 7
        %s401 = smul.addr %s400, 8
        %s402 = scalar_lea.vmem %s0, %s401
        %p403 = scmp.lt.s32.totalorder %s27, 7
        %s404 = scalar_select %p403, %s27, 7
        %s405 = smul.addr %s404, 8
        %s406 = scalar_lea.vmem %s1, %s405
        %p407 = scmp.lt.s32.totalorder %s27, 7
        %s408 = scalar_select %p407, %s27, 7
        %s409 = smul.addr %s408, 8
        %s410 = scalar_lea.vmem %s10, %s409
        %v412 = vld [vmem:[%s402] sm:$0xff]
        %v413 = vld [vmem:[%s406] sm:$0xff]
        %v414 = vpack.c.bf16 %v412, %v412
        %v415 = vld [vmem:[%s2] sm:$0xf]
        %v416 = vld [vmem:[%s2 + $0x4] sm:$0xf]
        %v417 = vld [vmem:[%s2 + $0x8] sm:$0xf]
        %v418 = vld [vmem:[%s2 + $0xc] sm:$0xf]
        %v419 = vld [vmem:[%s3] sm:$0x1]
        %v421 = vlaneseq
        %v422 = vshrl.u32 %v421, 7
        %v423 = vsub.s32 0, %v422
        %v424 = vrot.slane %v419, %v423
        %v430 = vunpack.c.l.b16 %v415
        %v431 = vunpack.c.l.b16 %v416
        %v432 = vunpack.c.l.b16 %v417
        %v433 = vunpack.c.l.b16 %v418
        %v434 = vpack.c.b16 %v431, %v430
        %v435 = vpack.c.b16 %v433, %v432
        %vm438 = vcmask 261120
        %v440 = vsel %vm438, %v414, 0
        %442 = vmatprep.subr.bf16.mxu0 0
        %443 = vmatpush1.bf16.msra.mxu0 0
        %444 = vmatprep.subr.bf16.mxu0 0
        %445 = vmatpush1.bf16.msra.mxu0 0
        %446 = vmatprep.subr.bf16.mxu0 0
        %447 = vmatpush1.bf16.msra.mxu0 0
        %448 = vmatprep.subr.bf16.mxu0 0
        %449 = vmatpush1.bf16.msra.mxu0 0
        %450 = vmatprep.subr.bf16.mxu0 0
        %451 = vmatpush1.bf16.msra.mxu0 0
        %452 = vmatprep.subr.bf16.mxu0 0
        %453 = vmatpush1.bf16.msra.mxu0 0
        %454 = vmatprep.subr.bf16.mxu0 0
        %455 = vmatpush1.bf16.msra.mxu0 %v435
        %456 = vmatprep.subr.bf16.mxu0 0
        %457 = vmatpush1.bf16.msra.mxu0 %v434
        %458 = vmatprep.subr.bf16.mxu0 0
        %459 = vmatpush2.bf16.msra.mxu0 0
        %460 = vmatprep.subr.bf16.mxu0 0
        %461 = vmatpush2.bf16.msra.mxu0 0
        %462 = vmatprep.subr.bf16.mxu0 0
        %463 = vmatpush2.bf16.msra.mxu0 0
        %464 = vmatprep.subr.bf16.mxu0 0
        %465 = vmatpush2.bf16.msra.mxu0 0
        %466 = vmatprep.subr.bf16.mxu0 0
        %467 = vmatpush2.bf16.msra.mxu0 0
        %468 = vmatprep.subr.bf16.mxu0 0
        %469 = vmatpush2.bf16.msra.mxu0 0
        %470 = vmatprep.subr.bf16.mxu0 0
        %471 = vmatpush2.bf16.msra.mxu0 0
        %472 = vmatprep.subr.bf16.mxu0 0
        %473 = vmatpush2.bf16.msra.mxu0 0
        %474 = vmatprep.mubr.bf16.mxu0 0
        %475 = vmatmul.mubr.bf16.gmra.mxu0 %v440
        %v476 = vpop.f32.mrf.mxu0
        %v477 = vadd.f32 %v424, %v476
        %v478 = vpop.f32.mrf.mxu0
        %v479 = vpop.f32.mrf.mxu0
        %v480 = vpop.f32.mrf.mxu0
        %481 = vdwg.mxu0
        %v482 = vmax.f32 %v477, 0.0
        %v483 = vpack.c.bf16 %v482, %v482
        %v484 = vld [vmem:[#allocation2] sm:$0xf]
        %v485 = vld [vmem:[#allocation2 + $0x4] sm:$0xf]
        %v486 = vld [vmem:[#allocation2 + $0x8] sm:$0xf]
        %v487 = vld [vmem:[#allocation2 + $0xc] sm:$0xf]
        %v488 = vld [vmem:[#allocation2 + $0x10] sm:$0xf]
        %v489 = vld [vmem:[#allocation2 + $0x14] sm:$0xf]
        %v490 = vld [vmem:[#allocation2 + $0x18] sm:$0xf]
        %v491 = vld [vmem:[#allocation2 + $0x1c] sm:$0xf]
        %v492 = vld [vmem:[#allocation2 + $0x20] sm:$0xf]
        %v493 = vld [vmem:[#allocation2 + $0x24] sm:$0xf]
        %v494 = vld [vmem:[#allocation2 + $0x28] sm:$0xf]
        %v495 = vld [vmem:[#allocation2 + $0x2c] sm:$0xf]
        %v496 = vld [vmem:[#allocation5] sm:$0x1]
        %v498 = vlaneseq
        %v499 = vshrl.u32 %v498, 7
        %v500 = vsub.s32 0, %v499
        %v501 = vrot.slane %v496, %v500
        %v515 = vunpack.c.l.b16 %v484
        %v516 = vunpack.c.l.b16 %v485
        %v517 = vunpack.c.l.b16 %v486
        %v518 = vunpack.c.l.b16 %v487
        %v519 = vunpack.c.l.b16 %v488
        %v520 = vunpack.c.l.b16 %v489
        %v521 = vunpack.c.l.b16 %v490
        %v522 = vunpack.c.l.b16 %v491
        %v523 = vunpack.c.l.b16 %v492
        %v524 = vunpack.c.l.b16 %v493
        %v525 = vunpack.c.l.b16 %v494
        %v526 = vunpack.c.l.b16 %v495
        %v527 = vpack.c.b16 %v516, %v515
        %v528 = vpack.c.b16 %v518, %v517
        %v529 = vpack.c.b16 %v520, %v519
        %v530 = vpack.c.b16 %v522, %v521
        %v531 = vpack.c.b16 %v524, %v523
        %v532 = vpack.c.b16 %v526, %v525
        %vm539 = vcmask 785408
        %v541 = vsel %vm539, %v483, 0
        %543 = vmatprep.subr.bf16.mxu0 0
        %544 = vmatpush1.bf16.msra.mxu0 0
        %545 = vmatprep.subr.bf16.mxu0 0
        %546 = vmatpush1.bf16.msra.mxu0 0
        %547 = vmatprep.subr.bf16.mxu0 0
        %548 = vmatpush1.bf16.msra.mxu0 %v532
        %549 = vmatprep.subr.bf16.mxu0 0
        %550 = vmatpush1.bf16.msra.mxu0 %v531
        %551 = vmatprep.subr.bf16.mxu0 0
        %552 = vmatpush1.bf16.msra.mxu0 %v530
        %553 = vmatprep.subr.bf16.mxu0 0
        %554 = vmatpush1.bf16.msra.mxu0 %v529
        %555 = vmatprep.subr.bf16.mxu0 0
        %556 = vmatpush1.bf16.msra.mxu0 %v528
        %557 = vmatprep.subr.bf16.mxu0 0
        %558 = vmatpush1.bf16.msra.mxu0 %v527
        %559 = vmatprep.subr.bf16.mxu0 0
        %560 = vmatpush2.bf16.msra.mxu0 0
        %561 = vmatprep.subr.bf16.mxu0 0
        %562 = vmatpush2.bf16.msra.mxu0 0
        %563 = vmatprep.subr.bf16.mxu0 0
        %564 = vmatpush2.bf16.msra.mxu0 0
        %565 = vmatprep.subr.bf16.mxu0 0
        %566 = vmatpush2.bf16.msra.mxu0 0
        %567 = vmatprep.subr.bf16.mxu0 0
        %568 = vmatpush2.bf16.msra.mxu0 0
        %569 = vmatprep.subr.bf16.mxu0 0
        %570 = vmatpush2.bf16.msra.mxu0 0
        %571 = vmatprep.subr.bf16.mxu0 0
        %572 = vmatpush2.bf16.msra.mxu0 0
        %573 = vmatprep.subr.bf16.mxu0 0
        %574 = vmatpush2.bf16.msra.mxu0 0
        %575 = vmatprep.mubr.bf16.mxu0 0
        %576 = vmatmul.mubr.bf16.gmra.mxu0 %v541
        %v577 = vpop.f32.mrf.mxu0
        %v578 = vadd.f32 %v501, %v577
        %v579 = vpop.f32.mrf.mxu0
        %v580 = vpop.f32.mrf.mxu0
        %v581 = vpop.f32.mrf.mxu0
        %582 = vdwg.mxu0
        %v583 = vmax.f32 %v578, 0.0
        %v584 = vpack.c.bf16 %v583, %v583
        %v585 = vld [vmem:[%s6] sm:$0xf]
        %v586 = vld [vmem:[%s6 + $0x4] sm:$0xf]
        %v587 = vld [vmem:[%s6 + $0x8] sm:$0xf]
        %v588 = vld [vmem:[%s6 + $0xc] sm:$0xf]
        %v589 = vld [vmem:[%s7] sm:$0x1]
        %v591 = vlaneseq
        %v592 = vshrl.u32 %v591, 7
        %v593 = vsub.s32 0, %v592
        %v594 = vrot.slane %v589, %v593
        %597 = vrot.lane.b32.xlu0 %v584, 64
        %v598 = vpop.permute.xlu0 %597
        %v603 = vunpack.c.l.b16 %v585
        %v604 = vunpack.c.l.b16 %v586
        %v605 = vunpack.c.l.b16 %v587
        %v606 = vunpack.c.l.b16 %v588
        %v607 = vpack.c.b16 %v604, %v603
        %v608 = vpack.c.b16 %v606, %v605
        %v612 = vsel %vm438, %v598, 0
        %614 = vmatprep.subr.bf16.mxu0 0
        %615 = vmatpush1.bf16.msra.mxu0 0
        %616 = vmatprep.subr.bf16.mxu0 0
        %617 = vmatpush1.bf16.msra.mxu0 0
        %618 = vmatprep.subr.bf16.mxu0 0
        %619 = vmatpush1.bf16.msra.mxu0 0
        %620 = vmatprep.subr.bf16.mxu0 0
        %621 = vmatpush1.bf16.msra.mxu0 0
        %622 = vmatprep.subr.bf16.mxu0 0
        %623 = vmatpush1.bf16.msra.mxu0 0
        %624 = vmatprep.subr.bf16.mxu0 0
        %625 = vmatpush1.bf16.msra.mxu0 0
        %626 = vmatprep.subr.bf16.mxu0 0
        %627 = vmatpush1.bf16.msra.mxu0 %v608
        %628 = vmatprep.subr.bf16.mxu0 0
        %629 = vmatpush1.bf16.msra.mxu0 %v607
        %630 = vmatprep.subr.bf16.mxu0 0
        %631 = vmatpush2.bf16.msra.mxu0 0
        %632 = vmatprep.subr.bf16.mxu0 0
        %633 = vmatpush2.bf16.msra.mxu0 0
        %634 = vmatprep.subr.bf16.mxu0 0
        %635 = vmatpush2.bf16.msra.mxu0 0
        %636 = vmatprep.subr.bf16.mxu0 0
        %637 = vmatpush2.bf16.msra.mxu0 0
        %638 = vmatprep.subr.bf16.mxu0 0
        %639 = vmatpush2.bf16.msra.mxu0 0
        %640 = vmatprep.subr.bf16.mxu0 0
        %641 = vmatpush2.bf16.msra.mxu0 0
        %642 = vmatprep.subr.bf16.mxu0 0
        %643 = vmatpush2.bf16.msra.mxu0 0
        %644 = vmatprep.subr.bf16.mxu0 0
        %645 = vmatpush2.bf16.msra.mxu0 0
        %646 = vmatprep.mubr.bf16.mxu0 0
        %647 = vmatmul.mubr.bf16.gmra.mxu0 %v612
        %v648 = vpop.f32.mrf.mxu0
        %v649 = vadd.f32 %v594, %v648
        %v650 = vpop.f32.mrf.mxu0
        %v651 = vpop.f32.mrf.mxu0
        %v652 = vpop.f32.mrf.mxu0
        %653 = vdwg.mxu0
        %v654 = vmax.f32 %v649, 0.0
        %v655 = vld [vmem:[%s8] sm:$0x1]
        %v657 = vlaneseq
        %v658 = vshrl.u32 %v657, 7
        %v659 = vsub.s32 0, %v658
        %v660 = vrot.slane %v655, %v659
        %v662 = vmul.f32 %v654, %v660
        %v663 = vsel %vm438, %v662, 0.0
        %664 = vadd.xlane.f32.xlu0 %v663
        %v665 = vpop.xlane.xlu0 %664
        %666 = vrot.lane.b32.xlu0 %v584, 96
        %v667 = vpop.permute.xlu0 %666
        %v669 = vsel %vm438, %v584, 0
        %v672 = vsel %vm438, %v667, 0
        %674 = vmatprep.subr.bf16.mxu0 0
        %675 = vmatpush1.bf16.xpose.msra.mxu0 0
        %676 = vmatprep.subr.bf16.mxu0 0
        %677 = vmatpush1.bf16.xpose.msra.mxu0 0
        %678 = vmatprep.subr.bf16.mxu0 0
        %679 = vmatpush1.bf16.xpose.msra.mxu0 0
        %680 = vmatprep.subr.bf16.mxu0 0
        %681 = vmatpush1.bf16.xpose.msra.mxu0 0
        %682 = vmatprep.subr.bf16.mxu0 0
        %683 = vmatpush1.bf16.xpose.msra.mxu0 0
        %684 = vmatprep.subr.bf16.mxu0 0
        %685 = vmatpush1.bf16.xpose.msra.mxu0 0
        %686 = vmatprep.subr.bf16.mxu0 0
        %687 = vmatpush1.bf16.xpose.msra.mxu0 0
        %688 = vmatprep.subr.bf16.mxu0 0
        %689 = vmatpush1.bf16.xpose.msra.mxu0 %v672
        %690 = vmatprep.subr.bf16.mxu0 0
        %691 = vmatpush2.bf16.xpose.msra.mxu0 0
        %692 = vmatprep.subr.bf16.mxu0 0
        %693 = vmatpush2.bf16.xpose.msra.mxu0 0
        %694 = vmatprep.subr.bf16.mxu0 0
        %695 = vmatpush2.bf16.xpose.msra.mxu0 0
        %696 = vmatprep.subr.bf16.mxu0 0
        %697 = vmatpush2.bf16.xpose.msra.mxu0 0
        %698 = vmatprep.subr.bf16.mxu0 0
        %699 = vmatpush2.bf16.xpose.msra.mxu0 0
        %700 = vmatprep.subr.bf16.mxu0 0
        %701 = vmatpush2.bf16.xpose.msra.mxu0 0
        %702 = vmatprep.subr.bf16.mxu0 0
        %703 = vmatpush2.bf16.xpose.msra.mxu0 0
        %704 = vmatprep.subr.bf16.mxu0 0
        %705 = vmatpush2.bf16.xpose.msra.mxu0 0
        %706 = vmatprep.mubr.bf16.mxu0 0
        %707 = vmatmul.mubr.bf16.gmra.mxu0 %v669
        %v708 = vpop.f32.mrf.mxu0
        %v709 = vadd.f32 0.0, %v708
        %v710 = vpop.f32.mrf.mxu0
        %v711 = vpop.f32.mrf.mxu0
        %v712 = vpop.f32.mrf.mxu0
        %713 = vdwg.mxu0
        %vm714 = vcmask 64512
        %v715 = vsel %vm714, %v709, -inf
        %716 = vmax.xlane.f32.xlu0 %v715
        %v717 = vpop.xlane.xlu0 %716
        %v718 = vsub.f32 %v709, %v717
        %v719 = vmul.f32 %v718, 1.442695
        %v720 = vpow.pop %v719
        %v721 = vsel %vm714, %v720, 0.0
        %722 = vadd.xlane.f32.xlu0 %v721
        %v723 = vpop.xlane.xlu0 %722
        %v724 = vrcp.pop %v723
        %v725 = vmul.f32 %v720, %v724
        %v726 = vmul.f32 %v665, %v413
        %728 = vrot.lane.b32.xlu0 %v583, 64
        %v729 = vpop.permute.xlu0 %728
        %732 = vrot.lane.b32.xlu0 %v726, 32
        %v733 = vpop.permute.xlu0 %732
        %v735 = vsel %vm438, %v729, %v733
        %vm736 = vcmask 285696
        %v737 = vsel %vm736, %v735, %v665
        %v738 = vpack.c.bf16 %v725, %v725
        %v739 = vpack.c.bf16 %v737, %v737
        %v741 = vsel %vm714, %v738, 0
        %vm743 = vcmask 1043456
        %v745 = vsel %vm743, %v739, 0
        %747 = vmatprep.subr.bf16.mxu0 0
        %748 = vmatpush1.bf16.msra.mxu0 0
        %749 = vmatprep.subr.bf16.mxu0 0
        %750 = vmatpush1.bf16.msra.mxu0 0
        %751 = vmatprep.subr.bf16.mxu0 0
        %752 = vmatpush1.bf16.msra.mxu0 0
        %753 = vmatprep.subr.bf16.mxu0 0
        %754 = vmatpush1.bf16.msra.mxu0 0
        %755 = vmatprep.subr.bf16.mxu0 0
        %756 = vmatpush1.bf16.msra.mxu0 0
        %757 = vmatprep.subr.bf16.mxu0 0
        %758 = vmatpush1.bf16.msra.mxu0 0
        %759 = vmatprep.subr.bf16.mxu0 0
        %760 = vmatpush1.bf16.msra.mxu0 0
        %761 = vmatprep.subr.bf16.mxu0 0
        %762 = vmatpush1.bf16.msra.mxu0 %v745
        %763 = vmatprep.subr.bf16.mxu0 0
        %764 = vmatpush2.bf16.msra.mxu0 0
        %765 = vmatprep.subr.bf16.mxu0 0
        %766 = vmatpush2.bf16.msra.mxu0 0
        %767 = vmatprep.subr.bf16.mxu0 0
        %768 = vmatpush2.bf16.msra.mxu0 0
        %769 = vmatprep.subr.bf16.mxu0 0
        %770 = vmatpush2.bf16.msra.mxu0 0
        %771 = vmatprep.subr.bf16.mxu0 0
        %772 = vmatpush2.bf16.msra.mxu0 0
        %773 = vmatprep.subr.bf16.mxu0 0
        %774 = vmatpush2.bf16.msra.mxu0 0
        %775 = vmatprep.subr.bf16.mxu0 0
        %776 = vmatpush2.bf16.msra.mxu0 0
        %777 = vmatprep.subr.bf16.mxu0 0
        %778 = vmatpush2.bf16.msra.mxu0 0
        %779 = vmatprep.mubr.bf16.mxu0 0
        %780 = vmatmul.mubr.bf16.gmra.mxu0 %v741
        %v781 = vpop.f32.mrf.mxu0
        %v782 = vadd.f32 0.0, %v781
        %v783 = vpop.f32.mrf.mxu0
        %v784 = vpop.f32.mrf.mxu0
        %v785 = vpop.f32.mrf.mxu0
        %786 = vdwg.mxu0
        %788 = vset.pattern.permute.xlu0 35
        %789 = vperm.xlu0 %788, %v782
        %v790 = vpop.permute.xlu0 %789
        %v792 = vmul.f32 %v413, %v790
        %794 = vrot.lane.b32.xlu0 %v792, 32
        %v795 = vpop.permute.xlu0 %794
        %v797 = vsub.f32 %v782, %v795
        %v798 = vadd.f32 %v412, %v782
        %799 = vst.msk [vmem:[%s392] sm:$0xff] %vm438, %v798
        %801 = vrot.lane.b32.xlu0 %v797, 96
        %v802 = vpop.permute.xlu0 %801
        %v804 = vadd.f32 %v413, %v802
        %vm805 = vcmask 23552
        %806 = vst.msk [vmem:[%s410] sm:$0xff] %vm805, %v804
        %s807 = sand.u32 %s234, 1
        %s808 = scalar_lea.sflag [#allocation4], %s807
        %s809 = sand.u32 %s234, 1
        %s810 = smul.addr %s809, 8
        %s811 = scalar_lea.vmem [#allocation7], %s810
        %p812 = scmp.lt.s32.totalorder %s27, 7
        %s813 = scalar_select %p812, %s27, 7
        %s814 = smul.addr %s813, 8
        %s815 = scalar_lea.vmem %s10, %s814
        // Predicated region
        $region65: #{tpu_custom_call.1} parent=55 // pred_check
          %p816 = pneg %p244
        $region66: #{tpu_custom_call.1} parent=55 // pred_check_branch
          %818 = sbr.rel (%p816) target = $region68
        $region67: #{tpu_custom_call.1} parent=55 // pred_region
          %s820 = ssub.s32 128, 128
          %821 = vsyncadd %s808, %s820
          %s822 = smul.addr %s27, 128
          %s823 = scalar_lea.hbm %s9, %s822
          %s825 = sshll.u32 %s811, 4
          %s826 = int_to_ptr.vmem [resolvable:$true] %s825
          %828 = dma.vmem_to_hbm [thread:$0]  %s826, 128, %s823, %s808
        $region68: #{tpu_custom_call.1} parent=55 // pred_fallthru
          _
        // Predicated region
        $region69: #{tpu_custom_call.1} parent=55 // pred_check
          %p829 = pneg %p270
        $region70: #{tpu_custom_call.1} parent=55 // pred_check_branch
          %831 = sbr.rel (%p829) target = $region72
        $region71: #{tpu_custom_call.1} parent=55 // pred_region
          _
        $region72: #{tpu_custom_call.1} parent=55 // pred_fallthru
          _
      $region56: #{tpu_custom_call.1} parent=5 // pred_fallthru
        _
      %p832 = scmp.le.s32.totalorder 2, %s22
      // Predicated region
      $region73: #{tpu_custom_call.1} parent=5 // pred_check
        %p833 = pneg %p832
      $region74: #{tpu_custom_call.1} parent=5 // pred_check_branch
        %835 = sbr.rel (%p833) target = $region76
      $region75: #{tpu_custom_call.1} parent=5 // pred_region
        %s836 = ssub.s32 %s22, 2
        // Predicated region
        $region77: #{tpu_custom_call.1} parent=75 // pred_check
          %p837 = pneg %p250
        $region78: #{tpu_custom_call.1} parent=75 // pred_check_branch
          %839 = sbr.rel (%p837) target = $region80
        $region79: #{tpu_custom_call.1} parent=75 // pred_region
          %s840 = sand.u32 %s235, 1
          %s841 = scalar_lea.sflag [#allocation4], %s840
          %s842 = sand.u32 %s235, 1
          %s843 = smul.addr %s842, 8
          %s844 = scalar_lea.vmem [#allocation7], %s843
          %845 = dma.done %s841, 128
        $region80: #{tpu_custom_call.1} parent=75 // pred_fallthru
          _
        // Predicated region
        $region81: #{tpu_custom_call.1} parent=75 // pred_check
          %p846 = pneg %p276
        $region82: #{tpu_custom_call.1} parent=75 // pred_check_branch
          %848 = sbr.rel (%p846) target = $region84
        $region83: #{tpu_custom_call.1} parent=75 // pred_region
          %p849 = scmp.lt.s32.totalorder %s28, 7
          %s850 = scalar_select %p849, %s28, 7
          %s851 = smul.addr %s850, 8
          %s852 = scalar_lea.vmem %s10, %s851
        $region84: #{tpu_custom_call.1} parent=75 // pred_fallthru
          _
      $region76: #{tpu_custom_call.1} parent=5 // pred_fallthru
        _
    $region6: #{tpu_custom_call.1} parent=1 // loop_footer
      %s26 = sadd.s32 1, %s22
    $region7: #{tpu_custom_call.1} parent=1 // loop_footer_branch
      %21 = sbr.rel target = $region3
    $region8: #{tpu_custom_call.1} parent=1 // loop_exit
      _
    %853 = vsyncpa [#allocation3], 1
    %s854 = scalar_lea.sflag [#allocation3], 1
    %855 = vsyncpa %s854, 1
    %856 = vsyncpa [#allocation6], 1
    %857 = vsyncpa [#allocation4], 1
    %s858 = scalar_lea.sflag [#allocation4], 1
    %859 = vsyncpa %s858, 1

</llo_original>
